<compile_context>
chip_gen: v5e
topology: v5e:2x2
jax: 0.10.0
libtpu: 0.0.40
codegen_flags: <defaults>
</compile_context>

<pallas_src>
import functools
import math

import jax
import jax.numpy as jnp
from jax.experimental import pallas as pl
from jax.experimental.pallas import tpu as pltpu

LANE = 128  # lane width of a vreg; slab + output are padded to this


# ----------------------------- Pallas kernel --------------------------------
def _multi_value_kernel(layer_meta, obs_ref, params_ref, out_ref):
    """layer_meta = tuple of (w_row_off, w_rows, b_row_off), all static.

    Layers 0..L-2 are Linear+ReLU (shared trunk + fused per-intention hidden),
    layer L-1 is the fused block-diagonal linear head.  All weights/biases live
    in one lane-padded slab `params_ref`; static 8-row-aligned slices are
    zero-cost views.
    """
    f32 = jnp.float32
    x = obs_ref[...]
    n = len(layer_meta)
    for i, (w_off, w_rows, b_off) in enumerate(layer_meta):
        w = params_ref[w_off:w_off + w_rows, :]        # (w_rows, LANE)
        b = params_ref[b_off:b_off + 1, :]             # (1, LANE)
        y = jnp.dot(x, w, preferred_element_type=f32) + b
        x = jnp.maximum(y, 0.0) if i < n - 1 else y
    out_ref[...] = x                                    # (B, LANE), unmasked vst


def multi_value_forward(obs, packed, num_intentions, intention=None):
    """Pallas wrapper: one program, 2 input DMAs (obs + packed param slab)."""
    param_slab, layer_meta = packed
    batch = obs.shape[0]

    kernel = functools.partial(_multi_value_kernel, layer_meta)
    vmem_spec = pl.BlockSpec(memory_space=pltpu.MemorySpace.VMEM)

    out = pl.pallas_call(
        kernel,
        out_shape=jax.ShapeDtypeStruct((batch, LANE), jnp.float32),
        in_specs=[vmem_spec, vmem_spec],
        out_specs=vmem_spec,
    )(obs, param_slab)

    values = out[:, :num_intentions].reshape(batch, num_intentions, 1)
    if intention is not None:
        # TODO(synk): single-intention path still computes all heads (cheap);
        # slice afterwards, matching forward(x, intention) semantics.
        values = values[:, intention:intention + 1, :]
    return values


# ------------------------- parameter construction ---------------------------
def _xavier_uniform(key, fan_in, fan_out, gain):
    bound = gain * math.sqrt(6.0 / (fan_in + fan_out))
    return jax.random.uniform(key, (fan_in, fan_out), jnp.float32, -bound, bound)


def make_raw_params(key, input_dim, shared_sizes, intention_sizes, num_intentions):
    """Per-layer / per-intention parameters, matching the PyTorch init scheme.

    Weights stored as (in, out) so y = x @ W + b (== PyTorch x @ W.T + b).
    """
    gain_relu = math.sqrt(2.0)   # calculate_gain('relu')
    gain_lin = 1.0               # calculate_gain('linear')

    n_keys = len(shared_sizes) + num_intentions * (len(intention_sizes) + 1)
    keys = iter(jax.random.split(key, n_keys))

    shared = []
    i_size = input_dim
    for o_size in shared_sizes:
        shared.append((_xavier_uniform(next(keys), i_size, o_size, gain_relu),
                       jnp.zeros((o_size,), jnp.float32)))
        i_size = o_size
    shared_out = i_size

    per_int_hidden = [[] for _ in range(len(intention_sizes))]
    heads = []
    for _ in range(num_intentions):
        i_size = shared_out
        for li, o_size in enumerate(intention_sizes):
            per_int_hidden[li].append(
                (_xavier_uniform(next(keys), i_size, o_size, gain_relu),
                 jnp.zeros((o_size,), jnp.float32)))
            i_size = o_size
        heads.append((_xavier_uniform(next(keys), i_size, 1, gain_lin),
                      jnp.zeros((1,), jnp.float32)))
    return shared, per_int_hidden, heads


def _block_diag(blocks):
    rows = sum(b.shape[0] for b in blocks)
    cols = sum(b.shape[1] for b in blocks)
    out = jnp.zeros((rows, cols), jnp.float32)
    r = c = 0
    for b in blocks:
        out = out.at[r:r + b.shape[0], c:c + b.shape[1]].set(b)
        r += b.shape[0]
        c += b.shape[1]
    return out


def fuse_params(raw_params):
    """Host-side fusion of per-intention layers (exact, zero off-diag blocks).

    * shared layers: unchanged
    * first per-intention hidden layer: concat weights along the output axis
    * deeper per-intention hidden layers: block-diagonal
    * scalar heads: one block-diagonal (N*H_last, N) weight
    """
    shared, per_int_hidden, heads = raw_params
    num_intentions = len(heads)

    fused = [(w, b) for (w, b) in shared]

    for li, layer in enumerate(per_int_hidden):
        if li == 0:
            w = jnp.concatenate([layer[n][0] for n in range(num_intentions)], axis=1)
        else:
            w = _block_diag([layer[n][0] for n in range(num_intentions)])
        b = jnp.concatenate([layer[n][1] for n in range(num_intentions)], axis=0)
        fused.append((w, b))

    w_head = _block_diag([heads[n][0] for n in range(num_intentions)])
    b_head = jnp.concatenate([heads[n][1] for n in range(num_intentions)], axis=0)
    fused.append((w_head, b_head))
    return fused


def _round_up(x, m):
    return ((x + m - 1) // m) * m


def pack_params(fused_params):
    """Pack all fused layers into one lane-padded (rows, LANE) f32 slab.

    Layer 0 weight keeps its true input width (contracts against raw obs);
    every deeper layer's weight is padded to LANE input rows because the
    running activation is LANE-wide (extra rows and extra activation lanes are
    all zero -> exact).  Biases occupy one row of an 8-row-aligned block,
    zero-padded to LANE lanes.  Returns (slab, layer_meta) with static offsets.
    """
    max_out = max(w.shape[1] for w, _ in fused_params)
    assert max_out <= LANE, "widen LANE (multiple of 128) for this config"

    blocks, meta, row = [], [], 0
    for li, (w, b) in enumerate(fused_params):
        d_in, d_out = w.shape
        w_rows = d_in if li == 0 else LANE          # rows the kernel contracts over
        w_rows_padded = _round_up(w_rows, 8)
        w_pad = jnp.zeros((w_rows_padded, LANE), jnp.float32)
        w_pad = w_pad.at[:d_in, :d_out].set(w)
        b_pad = jnp.zeros((8, LANE), jnp.float32)
        b_pad = b_pad.at[0, :d_out].set(b.reshape(-1))
        meta.append((row, w_rows, row + w_rows_padded))
        blocks.extend([w_pad, b_pad])
        row += w_rows_padded + 8
    slab = jnp.concatenate(blocks, axis=0)
    return slab, tuple(meta)


# ----------------------------- pure-JAX reference ----------------------------
def reference_forward(obs, raw_params, intention=None):
    shared, per_int_hidden, heads = raw_params
    x = obs
    for w, b in shared:
        x = jax.nn.relu(x @ w + b)
    num_intentions = len(heads)
    idxs = range(num_intentions) if intention is None else [intention]
    values = []
    for n in idxs:
        h = x
        for layer in per_int_hidden:
            w, b = layer[n]
            h = jax.nn.relu(h @ w + b)
        w_v, b_v = heads[n]
        values.append((h @ w_v + b_v)[:, None, :])   # unsqueeze(dim=-2)
    return jnp.concatenate(values, axis=-2)          # (B, N, 1)


# --------------------------------- main --------------------------------------
if __name__ == "__main__":
    B, INPUT_DIM, N_INT = 8, 16, 4
    SHARED_SIZES = (32,)
    INTENTION_SIZES = (32,)

    root = jax.random.PRNGKey(0)
    k_obs, k_par = jax.random.split(root, 2)

    obs = jax.random.normal(k_obs, (B, INPUT_DIM), jnp.float32)
    raw_params = make_raw_params(k_par, INPUT_DIM, SHARED_SIZES,
                                 INTENTION_SIZES, N_INT)
    fused_params = fuse_params(raw_params)       # hoisted out of the hot path
    packed = pack_params(fused_params)           # single lane-padded slab

    values = multi_value_forward(obs, packed, N_INT, intention=None)
    values = jax.block_until_ready(values)

    ref = reference_forward(obs, raw_params, intention=None)
    assert values.shape == (B, N_INT, 1), values.shape
    assert jnp.allclose(values, ref, atol=1e-4, rtol=1e-4), "mismatch vs reference"

    # Also check the single-intention path.
    v1 = multi_value_forward(obs, packed, N_INT, intention=2)
    v1 = jax.block_until_ready(v1)
    ref1 = reference_forward(obs, raw_params, intention=2)
    assert v1.shape == (B, 1, 1)
    assert jnp.allclose(v1, ref1, atol=1e-4, rtol=1e-4), "mismatch (intention) vs reference"

    print("KERNEL_OK")
</pallas_src>

<mosaic_0001>
module attributes {stable_mosaic.version = 11 : i64} {
  func.func @_multi_value_kernel(%arg0: memref<8x16xf32, #tpu.memory_space<vmem>>, %arg1: memref<296x128xf32, #tpu.memory_space<vmem>>, %arg2: memref<8x128xf32, #tpu.memory_space<vmem>>) attributes {dimension_semantics = [], scalar_prefetch = 0 : i64, scratch_operands = 0 : i64, tpu.core_type = #tpu.core_type<tc>} {
    %c0 = arith.constant 0 : index
    %c0_0 = arith.constant 0 : index
    %0 = vector.load %arg0[%c0, %c0_0] : memref<8x16xf32, #tpu.memory_space<vmem>>, vector<8x16xf32>
    %c0_1 = arith.constant 0 : index
    %c0_2 = arith.constant 0 : index
    %1 = vector.load %arg1[%c0_1, %c0_2] : memref<296x128xf32, #tpu.memory_space<vmem>>, vector<16x128xf32>
    %c16 = arith.constant 16 : index
    %c0_3 = arith.constant 0 : index
    %2 = vector.load %arg1[%c16, %c0_3] : memref<296x128xf32, #tpu.memory_space<vmem>>, vector<1x128xf32>
    %cst = arith.constant dense<0.000000e+00> : vector<8x128xf32>
    %3 = tpu.matmul %0, %1, %cst {dimension_numbers = #tpu.dot_dimension_numbers<[1], [0], [0], [1], [0, 0, 1, 1], [], []>} : vector<8x16xf32>, vector<16x128xf32>, vector<8x128xf32> -> vector<8x128xf32>
    %4 = vector.broadcast %2 : vector<1x128xf32> to vector<8x128xf32>
    %5 = arith.addf %3, %4 : vector<8x128xf32>
    %cst_4 = arith.constant 0.000000e+00 : f32
    %6 = vector.broadcast %cst_4 : f32 to vector<8x128xf32>
    %7 = arith.maximumf %5, %6 : vector<8x128xf32>
    %c24 = arith.constant 24 : index
    %c0_5 = arith.constant 0 : index
    %8 = vector.load %arg1[%c24, %c0_5] : memref<296x128xf32, #tpu.memory_space<vmem>>, vector<128x128xf32>
    %c152 = arith.constant 152 : index
    %c0_6 = arith.constant 0 : index
    %9 = vector.load %arg1[%c152, %c0_6] : memref<296x128xf32, #tpu.memory_space<vmem>>, vector<1x128xf32>
    %cst_7 = arith.constant dense<0.000000e+00> : vector<8x128xf32>
    %10 = tpu.matmul %7, %8, %cst_7 {dimension_numbers = #tpu.dot_dimension_numbers<[1], [0], [0], [1], [0, 0, 1, 1], [], []>} : vector<8x128xf32>, vector<128x128xf32>, vector<8x128xf32> -> vector<8x128xf32>
    %11 = vector.broadcast %9 : vector<1x128xf32> to vector<8x128xf32>
    %12 = arith.addf %10, %11 : vector<8x128xf32>
    %cst_8 = arith.constant 0.000000e+00 : f32
    %13 = vector.broadcast %cst_8 : f32 to vector<8x128xf32>
    %14 = arith.maximumf %12, %13 : vector<8x128xf32>
    %c160 = arith.constant 160 : index
    %c0_9 = arith.constant 0 : index
    %15 = vector.load %arg1[%c160, %c0_9] : memref<296x128xf32, #tpu.memory_space<vmem>>, vector<128x128xf32>
    %c288 = arith.constant 288 : index
    %c0_10 = arith.constant 0 : index
    %16 = vector.load %arg1[%c288, %c0_10] : memref<296x128xf32, #tpu.memory_space<vmem>>, vector<1x128xf32>
    %cst_11 = arith.constant dense<0.000000e+00> : vector<8x128xf32>
    %17 = tpu.matmul %14, %15, %cst_11 {dimension_numbers = #tpu.dot_dimension_numbers<[1], [0], [0], [1], [0, 0, 1, 1], [], []>} : vector<8x128xf32>, vector<128x128xf32>, vector<8x128xf32> -> vector<8x128xf32>
    %18 = vector.broadcast %16 : vector<1x128xf32> to vector<8x128xf32>
    %19 = arith.addf %17, %18 : vector<8x128xf32>
    %c0_12 = arith.constant 0 : index
    %c0_13 = arith.constant 0 : index
    %20 = vector.load %arg2[%c0_12, %c0_13] : memref<8x128xf32, #tpu.memory_space<vmem>>, vector<8x128xf32>
    tpu.vector_store %arg2[%c0_12, %c0_13], %19 {strides = array<i32>} : memref<8x128xf32, #tpu.memory_space<vmem>>, vector<8x128xf32>,
    return
  }
}

</mosaic_0001>

<llo_original>
// kernel: tpu_custom_call.1
$region0: #{tpu_custom_call.1}
  #allocation0 [shape = 'u32[]', space=smem, size = 0x4, offset = 0x4, fixed_abs, tag = 'smem constant byte address 0x4 - core index']
  #allocation1 [shape = 'u32[72,128]{1,0:T(1,128)}', space=vmem, size = 0x9000, scoped, tag = 'internal scratch']
  %s0 = inlined_call_operand.hbm [shape: f32[8,16], index: 0, kind: input, shape index: {}]
  %s1 = inlined_call_operand.hbm [shape: f32[296,128], index: 1, kind: input, shape index: {}]
  %s2 = inlined_call_operand.hbm [shape: f32[8,128], index: 2, kind: output, shape index: {}]
  %s3 = sld [smem:[#allocation0]]
  $region26: #{tpu_custom_call.1} parent=0
    _
  %s5 = ssub.s32 1, %s3
  %s6 = scalar_select 0, %s5, %s3
  $region1: #{tpu_custom_call.1} parent=0
    #allocation2 [shape = 'u8[4096]{0}', space=vmem, size = 0x1000, scoped, tag = 'input window, operand 0, single buffered']
    #allocation3 [shape = 's32[1]{0}', space=sflag, size = 0x4, scoped, tag = 'scoped memory for tpu_custom_call.1']
    #allocation4 [shape = 's32[1]{0}', space=sflag, size = 0x4, scoped, tag = 'scoped memory for tpu_custom_call.1']
    #allocation5 [shape = 'u8[151552]{0}', space=vmem, size = 0x25000, scoped, tag = 'input window, operand 1, single buffered']
    #allocation6 [shape = 's32[1]{0}', space=sflag, size = 0x4, scoped, tag = 'scoped memory for tpu_custom_call.1']
    #allocation7 [shape = 'u8[4096]{0}', space=vmem, size = 0x1000, scoped, tag = 'output window, operand 0, single buffered']
    %7 = vsyncpa [#allocation3], 0
    %8 = vsyncpa [#allocation6], 0
    %9 = vsyncpa [#allocation4], 0
    // Predicated region
    $region2: #{tpu_custom_call.1} parent=1 // pred_check
      _
    $region3: #{tpu_custom_call.1} parent=1 // pred_check_branch
      %11 = sbr.rel (0) target = $region5
    $region4: #{tpu_custom_call.1} parent=1 // pred_region
      %13 = vsyncadd [#allocation3], 0
      %s15 = sshll.u32 %s0, 4
      %s16 = int_to_ptr.hbm [resolvable:$true] %s15
      %s17 = sshll.u32 [#allocation2], 4
      %s18 = int_to_ptr.vmem [resolvable:$true] %s17
      %20 = dma.hbm_to_vmem [thread:$0]  %s16, 128, %s18, [#allocation3]
    $region5: #{tpu_custom_call.1} parent=1 // pred_fallthru
      _
    // Predicated region
    $region6: #{tpu_custom_call.1} parent=1 // pred_check
      _
    $region7: #{tpu_custom_call.1} parent=1 // pred_check_branch
      %22 = sbr.rel (0) target = $region9
    $region8: #{tpu_custom_call.1} parent=1 // pred_region
      %24 = vsyncadd [#allocation6], 0
      %s25 = sshll.u32 %s1, 4
      %s26 = int_to_ptr.hbm [resolvable:$true] %s25
      %s27 = sshll.u32 [#allocation5], 4
      %s28 = int_to_ptr.vmem [resolvable:$true] %s27
      %33 = dma.hbm_to_vmem [thread:$0]  %s26, 4736, %s28, [#allocation6], 128, 128, 8
    $region9: #{tpu_custom_call.1} parent=1 // pred_fallthru
      _
    // Predicated region
    $region10: #{tpu_custom_call.1} parent=1 // pred_check
      _
    $region11: #{tpu_custom_call.1} parent=1 // pred_check_branch
      %35 = sbr.rel (0) target = $region13
    $region12: #{tpu_custom_call.1} parent=1 // pred_region
      %37 = dma.done [#allocation3], 128
    $region13: #{tpu_custom_call.1} parent=1 // pred_fallthru
      _
    // Predicated region
    $region14: #{tpu_custom_call.1} parent=1 // pred_check
      _
    $region15: #{tpu_custom_call.1} parent=1 // pred_check_branch
      %39 = sbr.rel (0) target = $region17
    $region16: #{tpu_custom_call.1} parent=1 // pred_region
      %41 = dma.done [#allocation6], 4736
    $region17: #{tpu_custom_call.1} parent=1 // pred_fallthru
      _
    %v42 = vld [vmem:[#allocation2] sm:$0xff]
    %v43 = vld [vmem:[#allocation5] sm:$0xff]
    %v44 = vld [vmem:[#allocation5 + $0x8] sm:$0xff]
    %v45 = vld [vmem:[#allocation5 + $0x10] sm:$0x1]
    %v46 = vperm.slane %v45, 0
    %vm47 = vcmask 130048
    %v49 = vsel %vm47, %v42, 0
    %51 = vmatpush.msra.mxu0 0.0
    %52 = vmatpush.msra.mxu0 0.0
    %53 = vmatpush.msra.mxu0 0.0
    %54 = vmatpush.msra.mxu0 0.0
    %55 = vmatpush.msra.mxu0 0.0
    %56 = vmatpush.msra.mxu0 0.0
    %57 = vmatpush.msra.mxu0 0.0
    %58 = vmatpush.msra.mxu0 0.0
    %59 = vmatpush.msra.mxu0 0.0
    %60 = vmatpush.msra.mxu0 0.0
    %61 = vmatpush.msra.mxu0 0.0
    %62 = vmatpush.msra.mxu0 0.0
    %63 = vmatpush.msra.mxu0 0.0
    %64 = vmatpush.msra.mxu0 0.0
    %65 = vmatpush.msra.mxu0 %v44
    %66 = vmatpush.msra.mxu0 %v43
    %67 = vmatmul.f32.gmra.mxu0 %v49
    %v68 = vpop.f32.mrf.mxu0
    %v69 = vadd.f32 %v46, %v68
    %70 = vdwg.mxu0
    %v71 = vmax.f32 %v69, 0.0
    %v72 = vld [vmem:[#allocation5 + $0x18] sm:$0xff]
    %v73 = vld [vmem:[#allocation5 + $0x20] sm:$0xff]
    %v74 = vld [vmem:[#allocation5 + $0x28] sm:$0xff]
    %v75 = vld [vmem:[#allocation5 + $0x30] sm:$0xff]
    %v76 = vld [vmem:[#allocation5 + $0x38] sm:$0xff]
    %v77 = vld [vmem:[#allocation5 + $0x40] sm:$0xff]
    %v78 = vld [vmem:[#allocation5 + $0x48] sm:$0xff]
    %v79 = vld [vmem:[#allocation5 + $0x50] sm:$0xff]
    %v80 = vld [vmem:[#allocation5 + $0x58] sm:$0xff]
    %v81 = vld [vmem:[#allocation5 + $0x60] sm:$0xff]
    %v82 = vld [vmem:[#allocation5 + $0x68] sm:$0xff]
    %v83 = vld [vmem:[#allocation5 + $0x70] sm:$0xff]
    %v84 = vld [vmem:[#allocation5 + $0x78] sm:$0xff]
    %v85 = vld [vmem:[#allocation5 + $0x80] sm:$0xff]
    %v86 = vld [vmem:[#allocation5 + $0x88] sm:$0xff]
    %v87 = vld [vmem:[#allocation5 + $0x90] sm:$0xff]
    %v88 = vld [vmem:[#allocation5 + $0x98] sm:$0x1]
    %v89 = vperm.slane %v88, 0
    %90 = vmatpush.msra.mxu0 %v87
    %91 = vmatpush.msra.mxu0 %v86
    %92 = vmatpush.msra.mxu0 %v85
    %93 = vmatpush.msra.mxu0 %v84
    %94 = vmatpush.msra.mxu0 %v83
    %95 = vmatpush.msra.mxu0 %v82
    %96 = vmatpush.msra.mxu0 %v81
    %97 = vmatpush.msra.mxu0 %v80
    %98 = vmatpush.msra.mxu0 %v79
    %99 = vmatpush.msra.mxu0 %v78
    %100 = vmatpush.msra.mxu0 %v77
    %101 = vmatpush.msra.mxu0 %v76
    %102 = vmatpush.msra.mxu0 %v75
    %103 = vmatpush.msra.mxu0 %v74
    %104 = vmatpush.msra.mxu0 %v73
    %105 = vmatpush.msra.mxu0 %v72
    %106 = vmatmul.f32.gmra.mxu0 %v71
    %v107 = vpop.f32.mrf.mxu0
    %v108 = vadd.f32 %v89, %v107
    %109 = vdwg.mxu0
    %v110 = vmax.f32 %v108, 0.0
    %v111 = vld [vmem:[#allocation5 + $0xa0] sm:$0xff]
    %v112 = vld [vmem:[#allocation5 + $0xa8] sm:$0xff]
    %v113 = vld [vmem:[#allocation5 + $0xb0] sm:$0xff]
    %v114 = vld [vmem:[#allocation5 + $0xb8] sm:$0xff]
    %v115 = vld [vmem:[#allocation5 + $0xc0] sm:$0xff]
    %v116 = vld [vmem:[#allocation5 + $0xc8] sm:$0xff]
    %v117 = vld [vmem:[#allocation5 + $0xd0] sm:$0xff]
    %v118 = vld [vmem:[#allocation5 + $0xd8] sm:$0xff]
    %v119 = vld [vmem:[#allocation5 + $0xe0] sm:$0xff]
    %v120 = vld [vmem:[#allocation5 + $0xe8] sm:$0xff]
    %v121 = vld [vmem:[#allocation5 + $0xf0] sm:$0xff]
    %v122 = vld [vmem:[#allocation5 + $0xf8] sm:$0xff]
    %v123 = vld [vmem:[#allocation5 + $0x100] sm:$0xff]
    %v124 = vld [vmem:[#allocation5 + $0x108] sm:$0xff]
    %v125 = vld [vmem:[#allocation5 + $0x110] sm:$0xff]
    %v126 = vld [vmem:[#allocation5 + $0x118] sm:$0xff]
    %v127 = vld [vmem:[#allocation5 + $0x120] sm:$0x1]
    %v128 = vperm.slane %v127, 0
    %129 = vmatpush.msra.mxu0 %v126
    %130 = vmatpush.msra.mxu0 %v125
    %131 = vmatpush.msra.mxu0 %v124
    %132 = vmatpush.msra.mxu0 %v123
    %133 = vmatpush.msra.mxu0 %v122
    %134 = vmatpush.msra.mxu0 %v121
    %135 = vmatpush.msra.mxu0 %v120
    %136 = vmatpush.msra.mxu0 %v119
    %137 = vmatpush.msra.mxu0 %v118
    %138 = vmatpush.msra.mxu0 %v117
    %139 = vmatpush.msra.mxu0 %v116
    %140 = vmatpush.msra.mxu0 %v115
    %141 = vmatpush.msra.mxu0 %v114
    %142 = vmatpush.msra.mxu0 %v113
    %143 = vmatpush.msra.mxu0 %v112
    %144 = vmatpush.msra.mxu0 %v111
    %145 = vmatmul.f32.gmra.mxu0 %v110
    %v146 = vpop.f32.mrf.mxu0
    %v147 = vadd.f32 %v128, %v146
    %148 = vdwg.mxu0
    %149 = vst [vmem:[#allocation7] sm:$0xff] %v147
    // Predicated region
    $region18: #{tpu_custom_call.1} parent=1 // pred_check
      _
    $region19: #{tpu_custom_call.1} parent=1 // pred_check_branch
      %151 = sbr.rel (0) target = $region21
    $region20: #{tpu_custom_call.1} parent=1 // pred_region
      %153 = vsyncadd [#allocation4], 0
      %s155 = sshll.u32 [#allocation7], 4
      %s156 = int_to_ptr.vmem [resolvable:$true] %s155
      %s157 = sshll.u32 %s2, 4
      %s158 = int_to_ptr.hbm [resolvable:$true] %s157
      %160 = dma.vmem_to_hbm [thread:$0]  %s156, 128, %s158, [#allocation4]
    $region21: #{tpu_custom_call.1} parent=1 // pred_fallthru
      _
    // Predicated region
    $region22: #{tpu_custom_call.1} parent=1 // pred_check
      _
    $region23: #{tpu_custom_call.1} parent=1 // pred_check_branch
      %162 = sbr.rel (0) target = $region25
    $region24: #{tpu_custom_call.1} parent=1 // pred_region
      %164 = dma.done [#allocation4], 128
    $region25: #{tpu_custom_call.1} parent=1 // pred_fallthru
      _
    %165 = vsyncpa [#allocation3], 1
    %166 = vsyncpa [#allocation6], 1
    %167 = vsyncpa [#allocation4], 1

</llo_original>
